<compile_context>
chip_gen: v6e
topology: v6e:2x2x1
jax: 0.10.0
libtpu: 0.0.40
codegen_flags: <defaults>
</compile_context>

<pallas_src>
import functools

import jax
import jax.numpy as jnp
from jax.experimental import pallas as pl
from jax.experimental.pallas import tpu as pltpu


def _round_up(n, m):
    return ((n + m - 1) // m) * m


def mlp_kernel(x_ref, w_ref, b_ref, o_ref, *, sp, hp, a, compute_dtype):
    """One batch tile of the 3-layer MLP.

    x_ref: (TB, sp)            activations (zero-padded features)
    w_ref: (sp + 2*hp, hp)     packed, zero-padded weights:
                               rows [0:sp]        -> W1 (sp, hp)
                               rows [sp:sp+hp]    -> W2 (hp, hp)
                               rows [sp+hp:]      -> W3 (hp, a) in cols [:a]
    b_ref: (3, hp)             packed biases (f32), row 0/1/2 -> b1/b2/b3
    o_ref: (TB, a)             output tile
    Zero padding makes the padded hidden lanes exactly 0 after relu, so the
    padded computation is numerically identical to the unpadded one.
    """
    x = x_ref[...]                                    # (TB, sp)
    w1 = w_ref[0:sp, :]                               # (sp, hp)
    w2 = w_ref[sp:sp + hp, :]                         # (hp, hp)
    w3 = w_ref[sp + hp:sp + 2 * hp, 0:a]              # (hp, a)

    b = b_ref[...]                                    # (3, hp) f32
    b1 = b[0:1, :]
    b2 = b[1:2, :]
    b3 = b[2:3, 0:a]

    y1 = jnp.dot(x, w1, preferred_element_type=jnp.float32) + b1
    y1 = jnp.maximum(y1, 0.0).astype(compute_dtype)   # relu(fc1)
    y2 = jnp.dot(y1, w2, preferred_element_type=jnp.float32) + b2
    y2 = jnp.maximum(y2, 0.0).astype(compute_dtype)   # relu(fc2)
    y3 = jnp.dot(y2, w3, preferred_element_type=jnp.float32) + b3
    o_ref[...] = y3.astype(o_ref.dtype)               # fc3 (no activation)


def net_forward(x, params, *, block_rows=512, compute_dtype=jnp.float32):
    """x: (B, state_dim) f32. params: dict of w1,b1,w2,b2,w3,b3 (w as (in,out))."""
    w1, b1, w2, b2, w3, b3 = (params[k] for k in ("w1", "b1", "w2", "b2", "w3", "b3"))
    B, S = x.shape
    H1, H2, A = w1.shape[1], w2.shape[1], w3.shape[1]

    Sp = _round_up(S, 8)                    # padded input width (sublane multiple)
    HP = _round_up(max(H1, H2, A), 8)       # padded hidden width

    TB = min(block_rows, _round_up(B, 8))   # batch tile (multiple of 8)
    Bp = _round_up(B, TB)                   # padded batch

    # --- pack parameters into two slabs (2 DMAs instead of 6) ---------------
    # Weight slab: zero-padded; each layer's rows start at a multiple of 8.
    wslab = jnp.zeros((Sp + 2 * HP, HP), jnp.float32)
    wslab = wslab.at[:S, :H1].set(w1)
    wslab = wslab.at[Sp:Sp + H1, :H2].set(w2)
    wslab = wslab.at[Sp + HP:Sp + HP + H2, :A].set(w3)
    wslab = wslab.astype(compute_dtype)

    bslab = jnp.zeros((3, HP), jnp.float32)
    bslab = bslab.at[0, :H1].set(b1.reshape(-1))
    bslab = bslab.at[1, :H2].set(b2.reshape(-1))
    bslab = bslab.at[2, :A].set(b3.reshape(-1))

    # Zero-pad the batch and the feature dim of x.
    xp = jnp.zeros((Bp, Sp), compute_dtype)
    xp = xp.at[:B, :S].set(x.astype(compute_dtype))

    kernel = functools.partial(mlp_kernel, sp=Sp, hp=HP, a=A,
                               compute_dtype=compute_dtype)

    out = pl.pallas_call(
        kernel,
        out_shape=jax.ShapeDtypeStruct((Bp, A), jnp.float32),
        grid=(Bp // TB,),
        in_specs=[
            # x: one batch tile per grid step (pipelined / double-buffered)
            pl.BlockSpec((TB, Sp), lambda i: (i, 0)),
            # packed weights + biases: constant block index -> stay VMEM-resident
            pl.BlockSpec((Sp + 2 * HP, HP), lambda i: (0, 0)),
            pl.BlockSpec((3, HP), lambda i: (0, 0)),
        ],
        out_specs=pl.BlockSpec((TB, A), lambda i: (i, 0)),
        compiler_params=pltpu.CompilerParams(
            # batch axis is embarrassingly parallel -> megacore sharding on v7x
            dimension_semantics=("parallel",),
            # explicit budget: safe on v7x's 64 MiB VMEM as well as v5e/v6e
            vmem_limit_bytes=32 * 1024 * 1024,
        ),
    )(xp, wslab, bslab)
    return out[:B]


def init_params(key, state_dim=8, action_dim=4, hidden_dim=32):
    """Deterministic init mimicking PyTorch's default Linear init (uniform ±1/sqrt(fan_in))."""
    dims = [(state_dim, hidden_dim), (hidden_dim, hidden_dim * 2), (hidden_dim * 2, action_dim)]
    params = {}
    keys = jax.random.split(key, 2 * len(dims))
    for i, (fan_in, fan_out) in enumerate(dims):
        bound = 1.0 / jnp.sqrt(fan_in)
        params[f"w{i+1}"] = jax.random.uniform(
            keys[2 * i], (fan_in, fan_out), jnp.float32, -bound, bound)
        params[f"b{i+1}"] = jax.random.uniform(
            keys[2 * i + 1], (1, fan_out), jnp.float32, -bound, bound)
    return params


def net_forward_ref(x, params):
    h1 = jnp.maximum(x @ params["w1"] + params["b1"], 0.0)
    h2 = jnp.maximum(h1 @ params["w2"] + params["b2"], 0.0)
    return h2 @ params["w3"] + params["b3"]


if __name__ == "__main__":
    key = jax.random.PRNGKey(0)
    k_params, k_x, k_xl = jax.random.split(key, 3)

    state_dim, action_dim, hidden_dim = 8, 4, 32
    params = init_params(k_params, state_dim, action_dim, hidden_dim)

    # Small batch (DQN single-step action selection regime).
    x_small = jax.random.normal(k_x, (2, state_dim), jnp.float32)
    out_small = net_forward(x_small, params)
    jax.block_until_ready(out_small)
    ref_small = net_forward_ref(x_small, params)
    assert out_small.shape == (2, action_dim)
    assert jnp.allclose(out_small, ref_small, atol=1e-5, rtol=1e-5)

    # Larger batch exercising the batch-tiled grid (2 tiles of 512 rows).
    x_large = jax.random.normal(k_xl, (1024, state_dim), jnp.float32)
    out_large = net_forward(x_large, params)
    jax.block_until_ready(out_large)
    ref_large = net_forward_ref(x_large, params)
    assert out_large.shape == (1024, action_dim)
    assert jnp.allclose(out_large, ref_large, atol=1e-4, rtol=1e-4)

    print("KERNEL_OK")
</pallas_src>

<mosaic_0001>
module attributes {stable_mosaic.version = 11 : i64} {
  func.func @mlp_kernel(%arg0: i32, %arg1: memref<8x8xf32, #tpu.memory_space<vmem>>, %arg2: memref<136x64xf32, #tpu.memory_space<vmem>>, %arg3: memref<3x64xf32, #tpu.memory_space<vmem>>, %arg4: memref<8x4xf32, #tpu.memory_space<vmem>>) attributes {dimension_semantics = [#tpu.dimension_semantics<parallel>], iteration_bounds = array<i64: 1>, scalar_prefetch = 0 : i64, scratch_operands = 0 : i64, tpu.core_type = #tpu.core_type<tc>, window_params = [{transform_indices = @transform_0, window_bounds = array<i64: 8, 8>}, {pipeline_mode = #tpu.pipeline_mode<synchronous>, transform_indices = @transform_1, window_bounds = array<i64: 136, 64>}, {pipeline_mode = #tpu.pipeline_mode<synchronous>, transform_indices = @transform_2, window_bounds = array<i64: 3, 64>}, {transform_indices = @transform_3, window_bounds = array<i64: 8, 4>}]} {
    %c0 = arith.constant 0 : index
    %c0_0 = arith.constant 0 : index
    %0 = vector.load %arg1[%c0, %c0_0] : memref<8x8xf32, #tpu.memory_space<vmem>>, vector<8x8xf32>
    %c0_1 = arith.constant 0 : index
    %c0_2 = arith.constant 0 : index
    %1 = vector.load %arg2[%c0_1, %c0_2] : memref<136x64xf32, #tpu.memory_space<vmem>>, vector<8x64xf32>
    %c8 = arith.constant 8 : index
    %c0_3 = arith.constant 0 : index
    %2 = vector.load %arg2[%c8, %c0_3] : memref<136x64xf32, #tpu.memory_space<vmem>>, vector<64x64xf32>
    %c72 = arith.constant 72 : index
    %c0_4 = arith.constant 0 : index
    %3 = vector.load %arg2[%c72, %c0_4] : memref<136x64xf32, #tpu.memory_space<vmem>>, vector<64x4xf32>
    %c0_5 = arith.constant 0 : index
    %c0_6 = arith.constant 0 : index
    %4 = vector.load %arg3[%c0_5, %c0_6] : memref<3x64xf32, #tpu.memory_space<vmem>>, vector<3x64xf32>
    %5 = vector.extract_strided_slice %4 {offsets = [0, 0], sizes = [1, 64], strides = [1, 1]} : vector<3x64xf32> to vector<1x64xf32>
    %6 = vector.extract_strided_slice %4 {offsets = [1, 0], sizes = [1, 64], strides = [1, 1]} : vector<3x64xf32> to vector<1x64xf32>
    %7 = vector.extract_strided_slice %4 {offsets = [2, 0], sizes = [1, 4], strides = [1, 1]} : vector<3x64xf32> to vector<1x4xf32>
    %cst = arith.constant dense<0.000000e+00> : vector<8x64xf32>
    %8 = tpu.matmul %0, %1, %cst {dimension_numbers = #tpu.dot_dimension_numbers<[1], [0], [0], [1], [0, 0, 1, 1], [], []>} : vector<8x8xf32>, vector<8x64xf32>, vector<8x64xf32> -> vector<8x64xf32>
    %9 = vector.broadcast %5 : vector<1x64xf32> to vector<8x64xf32>
    %10 = arith.addf %8, %9 : vector<8x64xf32>
    %cst_7 = arith.constant 0.000000e+00 : f32
    %11 = vector.broadcast %cst_7 : f32 to vector<8x64xf32>
    %12 = arith.maximumf %10, %11 : vector<8x64xf32>
    %cst_8 = arith.constant dense<0.000000e+00> : vector<8x64xf32>
    %13 = tpu.matmul %12, %2, %cst_8 {dimension_numbers = #tpu.dot_dimension_numbers<[1], [0], [0], [1], [0, 0, 1, 1], [], []>} : vector<8x64xf32>, vector<64x64xf32>, vector<8x64xf32> -> vector<8x64xf32>
    %14 = vector.broadcast %6 : vector<1x64xf32> to vector<8x64xf32>
    %15 = arith.addf %13, %14 : vector<8x64xf32>
    %cst_9 = arith.constant 0.000000e+00 : f32
    %16 = vector.broadcast %cst_9 : f32 to vector<8x64xf32>
    %17 = arith.maximumf %15, %16 : vector<8x64xf32>
    %cst_10 = arith.constant dense<0.000000e+00> : vector<8x4xf32>
    %18 = tpu.matmul %17, %3, %cst_10 {dimension_numbers = #tpu.dot_dimension_numbers<[1], [0], [0], [1], [0, 0, 1, 1], [], []>} : vector<8x64xf32>, vector<64x4xf32>, vector<8x4xf32> -> vector<8x4xf32>
    %19 = vector.broadcast %7 : vector<1x4xf32> to vector<8x4xf32>
    %20 = arith.addf %18, %19 : vector<8x4xf32>
    %c0_11 = arith.constant 0 : index
    %c0_12 = arith.constant 0 : index
    %21 = vector.load %arg4[%c0_11, %c0_12] : memref<8x4xf32, #tpu.memory_space<vmem>>, vector<8x4xf32>
    tpu.vector_store %arg4[%c0_11, %c0_12], %20 {strides = array<i32>} : memref<8x4xf32, #tpu.memory_space<vmem>>, vector<8x4xf32>,
    return
  }
  func.func @transform_0(%arg0: i32) -> (i32, i32) {
    %c0_i32 = arith.constant 0 : i32
    %c0_i32_0 = arith.constant 0 : i32
    return %arg0, %c0_i32 : i32, i32
  }
  func.func @transform_1(%arg0: i32) -> (i32, i32) {
    %c0_i32 = arith.constant 0 : i32
    %c0_i32_0 = arith.constant 0 : i32
    %c0_i32_1 = arith.constant 0 : i32
    return %c0_i32, %c0_i32_0 : i32, i32
  }
  func.func @transform_2(%arg0: i32) -> (i32, i32) {
    %c0_i32 = arith.constant 0 : i32
    %c0_i32_0 = arith.constant 0 : i32
    %c0_i32_1 = arith.constant 0 : i32
    return %c0_i32, %c0_i32_0 : i32, i32
  }
  func.func @transform_3(%arg0: i32) -> (i32, i32) {
    %c0_i32 = arith.constant 0 : i32
    %c0_i32_0 = arith.constant 0 : i32
    return %arg0, %c0_i32 : i32, i32
  }
}

</mosaic_0001>

<llo_original>
// kernel: tpu_custom_call.1
$region0: #{tpu_custom_call.1}
  #allocation0 [shape = 'u32[]', space=smem, size = 0x4, offset = 0x4, fixed_abs, tag = 'smem constant byte address 0x4 - core index']
  #allocation1 [shape = 'u32[144,128]{1,0:T(1,128)}', space=vmem, size = 0x12000, scoped, tag = 'internal scratch']
  %s0 = inlined_call_operand.vmem [shape: f32[8,8], index: 0, kind: input, shape index: {}]
  %s1 = inlined_call_operand.vmem [shape: f32[136,64], index: 1, kind: input, shape index: {}]
  %s2 = inlined_call_operand.vmem [shape: f32[3,64], index: 2, kind: input, shape index: {}]
  %s3 = inlined_call_operand.vmem [shape: f32[8,4], index: 3, kind: output, shape index: {}]
  %s4 = sld [smem:[#allocation0]]
  $region22: #{tpu_custom_call.1} parent=0
    _
  %s6 = ssub.s32 1, %s4
  %s7 = scalar_select 0, %s6, %s4
  // Predicated region
  $region2: #{tpu_custom_call.1} parent=0 // pred_check
    _
  $region3: #{tpu_custom_call.1} parent=0 // pred_check_branch
    %9 = sbr.rel (0) target = $region5
  $region4: #{tpu_custom_call.1} parent=0 // pred_region
    _
  $region5: #{tpu_custom_call.1} parent=0 // pred_fallthru
    _
  // Predicated region
  $region6: #{tpu_custom_call.1} parent=0 // pred_check
    _
  $region7: #{tpu_custom_call.1} parent=0 // pred_check_branch
    %11 = sbr.rel (0) target = $region9
  $region8: #{tpu_custom_call.1} parent=0 // pred_region
    _
  $region9: #{tpu_custom_call.1} parent=0 // pred_fallthru
    _
  // Predicated region
  $region10: #{tpu_custom_call.1} parent=0 // pred_check
    _
  $region11: #{tpu_custom_call.1} parent=0 // pred_check_branch
    %13 = sbr.rel (0) target = $region13
  $region12: #{tpu_custom_call.1} parent=0 // pred_region
    _
  $region13: #{tpu_custom_call.1} parent=0 // pred_fallthru
    _
  %v14 = vld [vmem:[%s0] sm:$0xff]
  %v15 = vld [vmem:[%s1] sm:$0xff]
  %v16 = vld [vmem:[%s1 + $0x8] sm:$0xff]
  %v17 = vld [vmem:[%s1 + $0x10] sm:$0xff]
  %v18 = vld [vmem:[%s1 + $0x18] sm:$0xff]
  %v19 = vld [vmem:[%s1 + $0x20] sm:$0xff]
  %v20 = vld [vmem:[%s1 + $0x28] sm:$0xff]
  %v21 = vld [vmem:[%s1 + $0x30] sm:$0xff]
  %v22 = vld [vmem:[%s1 + $0x38] sm:$0xff]
  %v23 = vld [vmem:[%s1 + $0x40] sm:$0xff]
  %v24 = vld [vmem:[%s1 + $0x48] sm:$0xff]
  %v25 = vld [vmem:[%s1 + $0x50] sm:$0xff]
  %v26 = vld [vmem:[%s1 + $0x58] sm:$0xff]
  %v27 = vld [vmem:[%s1 + $0x60] sm:$0xff]
  %v28 = vld [vmem:[%s1 + $0x68] sm:$0xff]
  %v29 = vld [vmem:[%s1 + $0x70] sm:$0xff]
  %v30 = vld [vmem:[%s1 + $0x78] sm:$0xff]
  %v31 = vld [vmem:[%s1 + $0x80] sm:$0xff]
  %v32 = vld [vmem:[%s2] sm:$0x7]
  %v33 = vlaneseq
  %v34 = vshrl.u32 %v33, 7
  %v35 = vsub.s32 0, %v34
  %v36 = vrot.slane %v32, %v35
  %vm37 = vcmask 64512
  %v39 = vsel %vm37, %v14, 0
  %41 = vmatprep.subr.mxu0 0.0
  %42 = vmatpush1.msra.mxu0 0.0
  %43 = vmatprep.subr.mxu0 0.0
  %44 = vmatpush1.msra.mxu0 0.0
  %45 = vmatprep.subr.mxu0 0.0
  %46 = vmatpush1.msra.mxu0 0.0
  %47 = vmatprep.subr.mxu0 0.0
  %48 = vmatpush1.msra.mxu0 0.0
  %49 = vmatprep.subr.mxu0 0.0
  %50 = vmatpush1.msra.mxu0 0.0
  %51 = vmatprep.subr.mxu0 0.0
  %52 = vmatpush1.msra.mxu0 0.0
  %53 = vmatprep.subr.mxu0 0.0
  %54 = vmatpush1.msra.mxu0 0.0
  %55 = vmatprep.subr.mxu0 0.0
  %56 = vmatpush1.msra.mxu0 0.0
  %57 = vmatprep.subr.mxu0 0.0
  %58 = vmatpush1.msra.mxu0 0.0
  %59 = vmatprep.subr.mxu0 0.0
  %60 = vmatpush1.msra.mxu0 0.0
  %61 = vmatprep.subr.mxu0 0.0
  %62 = vmatpush1.msra.mxu0 0.0
  %63 = vmatprep.subr.mxu0 0.0
  %64 = vmatpush1.msra.mxu0 0.0
  %65 = vmatprep.subr.mxu0 0.0
  %66 = vmatpush1.msra.mxu0 0.0
  %67 = vmatprep.subr.mxu0 0.0
  %68 = vmatpush1.msra.mxu0 0.0
  %69 = vmatprep.subr.mxu0 0.0
  %70 = vmatpush1.msra.mxu0 0.0
  %71 = vmatprep.subr.mxu0 0.0
  %72 = vmatpush1.msra.mxu0 %v15
  %73 = vmatprep.subr.mxu0 0.0
  %74 = vmatpush2.msra.mxu0 0.0
  %75 = vmatprep.subr.mxu0 0.0
  %76 = vmatpush2.msra.mxu0 0.0
  %77 = vmatprep.subr.mxu0 0.0
  %78 = vmatpush2.msra.mxu0 0.0
  %79 = vmatprep.subr.mxu0 0.0
  %80 = vmatpush2.msra.mxu0 0.0
  %81 = vmatprep.subr.mxu0 0.0
  %82 = vmatpush2.msra.mxu0 0.0
  %83 = vmatprep.subr.mxu0 0.0
  %84 = vmatpush2.msra.mxu0 0.0
  %85 = vmatprep.subr.mxu0 0.0
  %86 = vmatpush2.msra.mxu0 0.0
  %87 = vmatprep.subr.mxu0 0.0
  %88 = vmatpush2.msra.mxu0 0.0
  %89 = vmatprep.subr.mxu0 0.0
  %90 = vmatpush2.msra.mxu0 0.0
  %91 = vmatprep.subr.mxu0 0.0
  %92 = vmatpush2.msra.mxu0 0.0
  %93 = vmatprep.subr.mxu0 0.0
  %94 = vmatpush2.msra.mxu0 0.0
  %95 = vmatprep.subr.mxu0 0.0
  %96 = vmatpush2.msra.mxu0 0.0
  %97 = vmatprep.subr.mxu0 0.0
  %98 = vmatpush2.msra.mxu0 0.0
  %99 = vmatprep.subr.mxu0 0.0
  %100 = vmatpush2.msra.mxu0 0.0
  %101 = vmatprep.subr.mxu0 0.0
  %102 = vmatpush2.msra.mxu0 0.0
  %103 = vmatprep.subr.mxu0 0.0
  %104 = vmatpush2.msra.mxu0 0.0
  %105 = vmatprep.mubr.f32.mxu0 0.0
  %106 = vmatmul.mubr.f32.gmra.mxu0 %v39
  %v107 = vpop.f32.mrf.mxu0
  %v108 = vadd.f32 %v36, %v107
  %v109 = vpop.f32.mrf.mxu0
  %110 = vdwg.mxu0
  %v111 = vmax.f32 %v108, 0.0
  %v112 = vlaneseq
  %v113 = vshrl.u32 %v112, 7
  %v114 = vsub.s32 1, %v113
  %v115 = vrot.slane %v32, %v114
  %vm116 = vcmask 523264
  %v118 = vsel %vm116, %v111, 0
  %120 = vmatprep.subr.mxu0 0.0
  %121 = vmatpush1.msra.mxu0 0.0
  %122 = vmatprep.subr.mxu0 0.0
  %123 = vmatpush1.msra.mxu0 0.0
  %124 = vmatprep.subr.mxu0 0.0
  %125 = vmatpush1.msra.mxu0 0.0
  %126 = vmatprep.subr.mxu0 0.0
  %127 = vmatpush1.msra.mxu0 0.0
  %128 = vmatprep.subr.mxu0 0.0
  %129 = vmatpush1.msra.mxu0 0.0
  %130 = vmatprep.subr.mxu0 0.0
  %131 = vmatpush1.msra.mxu0 0.0
  %132 = vmatprep.subr.mxu0 0.0
  %133 = vmatpush1.msra.mxu0 0.0
  %134 = vmatprep.subr.mxu0 0.0
  %135 = vmatpush1.msra.mxu0 0.0
  %136 = vmatprep.subr.mxu0 0.0
  %137 = vmatpush1.msra.mxu0 %v23
  %138 = vmatprep.subr.mxu0 0.0
  %139 = vmatpush1.msra.mxu0 %v22
  %140 = vmatprep.subr.mxu0 0.0
  %141 = vmatpush1.msra.mxu0 %v21
  %142 = vmatprep.subr.mxu0 0.0
  %143 = vmatpush1.msra.mxu0 %v20
  %144 = vmatprep.subr.mxu0 0.0
  %145 = vmatpush1.msra.mxu0 %v19
  %146 = vmatprep.subr.mxu0 0.0
  %147 = vmatpush1.msra.mxu0 %v18
  %148 = vmatprep.subr.mxu0 0.0
  %149 = vmatpush1.msra.mxu0 %v17
  %150 = vmatprep.subr.mxu0 0.0
  %151 = vmatpush1.msra.mxu0 %v16
  %152 = vmatprep.subr.mxu0 0.0
  %153 = vmatpush2.msra.mxu0 0.0
  %154 = vmatprep.subr.mxu0 0.0
  %155 = vmatpush2.msra.mxu0 0.0
  %156 = vmatprep.subr.mxu0 0.0
  %157 = vmatpush2.msra.mxu0 0.0
  %158 = vmatprep.subr.mxu0 0.0
  %159 = vmatpush2.msra.mxu0 0.0
  %160 = vmatprep.subr.mxu0 0.0
  %161 = vmatpush2.msra.mxu0 0.0
  %162 = vmatprep.subr.mxu0 0.0
  %163 = vmatpush2.msra.mxu0 0.0
  %164 = vmatprep.subr.mxu0 0.0
  %165 = vmatpush2.msra.mxu0 0.0
  %166 = vmatprep.subr.mxu0 0.0
  %167 = vmatpush2.msra.mxu0 0.0
  %168 = vmatprep.subr.mxu0 0.0
  %169 = vmatpush2.msra.mxu0 0.0
  %170 = vmatprep.subr.mxu0 0.0
  %171 = vmatpush2.msra.mxu0 0.0
  %172 = vmatprep.subr.mxu0 0.0
  %173 = vmatpush2.msra.mxu0 0.0
  %174 = vmatprep.subr.mxu0 0.0
  %175 = vmatpush2.msra.mxu0 0.0
  %176 = vmatprep.subr.mxu0 0.0
  %177 = vmatpush2.msra.mxu0 0.0
  %178 = vmatprep.subr.mxu0 0.0
  %179 = vmatpush2.msra.mxu0 0.0
  %180 = vmatprep.subr.mxu0 0.0
  %181 = vmatpush2.msra.mxu0 0.0
  %182 = vmatprep.subr.mxu0 0.0
  %183 = vmatpush2.msra.mxu0 0.0
  %184 = vmatprep.mubr.f32.mxu0 0.0
  %185 = vmatmul.mubr.f32.gmra.mxu0 %v118
  %v186 = vpop.f32.mrf.mxu0
  %v187 = vadd.f32 %v115, %v186
  %v188 = vpop.f32.mrf.mxu0
  %189 = vdwg.mxu0
  %v190 = vmax.f32 %v187, 0.0
  %v191 = vlaneseq
  %v192 = vshrl.u32 %v191, 7
  %v193 = vsub.s32 2, %v192
  %v194 = vrot.slane %v32, %v193
  %v196 = vsel %vm116, %v190, 0
  %198 = vmatprep.subr.mxu0 0.0
  %199 = vmatpush1.msra.mxu0 0.0
  %200 = vmatprep.subr.mxu0 0.0
  %201 = vmatpush1.msra.mxu0 0.0
  %202 = vmatprep.subr.mxu0 0.0
  %203 = vmatpush1.msra.mxu0 0.0
  %204 = vmatprep.subr.mxu0 0.0
  %205 = vmatpush1.msra.mxu0 0.0
  %206 = vmatprep.subr.mxu0 0.0
  %207 = vmatpush1.msra.mxu0 0.0
  %208 = vmatprep.subr.mxu0 0.0
  %209 = vmatpush1.msra.mxu0 0.0
  %210 = vmatprep.subr.mxu0 0.0
  %211 = vmatpush1.msra.mxu0 0.0
  %212 = vmatprep.subr.mxu0 0.0
  %213 = vmatpush1.msra.mxu0 0.0
  %214 = vmatprep.subr.mxu0 0.0
  %215 = vmatpush1.msra.mxu0 %v31
  %216 = vmatprep.subr.mxu0 0.0
  %217 = vmatpush1.msra.mxu0 %v30
  %218 = vmatprep.subr.mxu0 0.0
  %219 = vmatpush1.msra.mxu0 %v29
  %220 = vmatprep.subr.mxu0 0.0
  %221 = vmatpush1.msra.mxu0 %v28
  %222 = vmatprep.subr.mxu0 0.0
  %223 = vmatpush1.msra.mxu0 %v27
  %224 = vmatprep.subr.mxu0 0.0
  %225 = vmatpush1.msra.mxu0 %v26
  %226 = vmatprep.subr.mxu0 0.0
  %227 = vmatpush1.msra.mxu0 %v25
  %228 = vmatprep.subr.mxu0 0.0
  %229 = vmatpush1.msra.mxu0 %v24
  %230 = vmatprep.subr.mxu0 0.0
  %231 = vmatpush2.msra.mxu0 0.0
  %232 = vmatprep.subr.mxu0 0.0
  %233 = vmatpush2.msra.mxu0 0.0
  %234 = vmatprep.subr.mxu0 0.0
  %235 = vmatpush2.msra.mxu0 0.0
  %236 = vmatprep.subr.mxu0 0.0
  %237 = vmatpush2.msra.mxu0 0.0
  %238 = vmatprep.subr.mxu0 0.0
  %239 = vmatpush2.msra.mxu0 0.0
  %240 = vmatprep.subr.mxu0 0.0
  %241 = vmatpush2.msra.mxu0 0.0
  %242 = vmatprep.subr.mxu0 0.0
  %243 = vmatpush2.msra.mxu0 0.0
  %244 = vmatprep.subr.mxu0 0.0
  %245 = vmatpush2.msra.mxu0 0.0
  %246 = vmatprep.subr.mxu0 0.0
  %247 = vmatpush2.msra.mxu0 0.0
  %248 = vmatprep.subr.mxu0 0.0
  %249 = vmatpush2.msra.mxu0 0.0
  %250 = vmatprep.subr.mxu0 0.0
  %251 = vmatpush2.msra.mxu0 0.0
  %252 = vmatprep.subr.mxu0 0.0
  %253 = vmatpush2.msra.mxu0 0.0
  %254 = vmatprep.subr.mxu0 0.0
  %255 = vmatpush2.msra.mxu0 0.0
  %256 = vmatprep.subr.mxu0 0.0
  %257 = vmatpush2.msra.mxu0 0.0
  %258 = vmatprep.subr.mxu0 0.0
  %259 = vmatpush2.msra.mxu0 0.0
  %260 = vmatprep.subr.mxu0 0.0
  %261 = vmatpush2.msra.mxu0 0.0
  %262 = vmatprep.mubr.f32.mxu0 0.0
  %263 = vmatmul.mubr.f32.gmra.mxu0 %v196
  %v264 = vpop.f32.mrf.mxu0
  %v265 = vadd.f32 %v194, %v264
  %v266 = vpop.f32.mrf.mxu0
  %267 = vdwg.mxu0
  %vm268 = vcmask 31744
  %269 = vst.msk [vmem:[%s3] sm:$0xff] %vm268, %v265
  // Predicated region
  $region14: #{tpu_custom_call.1} parent=0 // pred_check
    _
  $region15: #{tpu_custom_call.1} parent=0 // pred_check_branch
    %271 = sbr.rel (0) target = $region17
  $region16: #{tpu_custom_call.1} parent=0 // pred_region
    _
  $region17: #{tpu_custom_call.1} parent=0 // pred_fallthru
    _
  // Predicated region
  $region18: #{tpu_custom_call.1} parent=0 // pred_check
    _
  $region19: #{tpu_custom_call.1} parent=0 // pred_check_branch
    %273 = sbr.rel (0) target = $region21
  $region20: #{tpu_custom_call.1} parent=0 // pred_region
    _
  $region21: #{tpu_custom_call.1} parent=0 // pred_fallthru
    _

</llo_original>
